<compile_context>
chip_gen: v5e
topology: v5e:2x2
jax: 0.10.0
libtpu: 0.0.40
codegen_flags: <defaults>
</compile_context>

<pallas_src>
import functools

import jax
import jax.numpy as jnp
from jax.experimental import pallas as pl
from jax.experimental.pallas import tpu as pltpu


def _dropout_kernel(seed_ref, x_ref, o_ref, *, keep_prob: float):
    tm, cols = x_ref.shape

    # Global element index of every lane in this tile (uint32; wraps for >4G
    # elements, which merely recycles the hash stream -- fine for dropout).
    row = jax.lax.broadcasted_iota(jnp.int32, (tm, cols), 0).astype(jnp.uint32)
    col = jax.lax.broadcasted_iota(jnp.int32, (tm, cols), 1).astype(jnp.uint32)
    row_off = pl.program_id(0).astype(jnp.uint32) * jnp.uint32(tm)
    gidx = (row_off + row) * jnp.uint32(cols) + col

    # Seed word mixed multiplicatively (independent streams per seed), then a
    # counter-based hash (lowbias32-style finalizer): mul/xor/shift only.
    seed = seed_ref[0].astype(jnp.uint32) * jnp.uint32(0x9E3779B9)
    h = gidx ^ seed
    h = h ^ (h >> 16)
    h = h * jnp.uint32(0x7FEB352D)
    h = h ^ (h >> 15)
    h = h * jnp.uint32(0x846CA68B)
    h = h ^ (h >> 16)

    # keep iff U32 < keep_prob * 2^32  (exactly Bernoulli(keep_prob)).
    thr = jnp.uint32(min(int(keep_prob * 2.0**32), 2**32 - 1))

    xv = x_ref[...]
    scale = jnp.asarray(1.0 / keep_prob, dtype=xv.dtype)
    o_ref[...] = jnp.where(h < thr, xv * scale, jnp.zeros_like(xv))


def my_dropout(x, p: float = 0.5, *, training: bool = True, seed: int = 0):
    """Pallas equivalent of MyDropout.forward."""
    if p < 0.0 or p > 1.0:
        raise ValueError(f"dropout probability has to be between 0 and 1, but got {p}")
    if not training or p == 0.0:
        return x
    if p == 1.0:
        return jnp.zeros_like(x)
    keep_prob = 1.0 - p

    orig_shape = x.shape
    orig_dtype = x.dtype
    numel = x.size
    dtype_bytes = jnp.dtype(orig_dtype).itemsize

    # Pick the widest lane-dense column count that divides numel (no padding
    # in the common NCHW-activation case).  Fall back to 128 + padding.
    cols = None
    for c in (2048, 1024, 512, 256, 128):
        if numel % c == 0:
            cols = c
            break

    flat = jnp.reshape(x, (-1,))
    padded = False
    if cols is None:
        cols = 128
        pad = (-numel) % cols
        flat = jnp.pad(flat, (0, pad))
        padded = True
    rows = flat.size // cols
    x2d = jnp.reshape(flat, (rows, cols))

    # Row-tile size targeting ~2 MiB per buffer (multiple of 8 sublanes).
    # 2x in + 2x out double-buffers = ~8 MiB, safe on v5e/v6e/v7x defaults.
    target_bytes = 2 * 1024 * 1024
    bytes_per_row = cols * dtype_bytes
    tm = max(8, (target_bytes // bytes_per_row) // 8 * 8)
    tm = min(tm, rows)  # full-extent block when the array is small
    grid = (pl.cdiv(rows, tm),)

    seed_arr = jnp.asarray([seed], dtype=jnp.int32)

    out2d = pl.pallas_call(
        functools.partial(_dropout_kernel, keep_prob=keep_prob),
        out_shape=jax.ShapeDtypeStruct((rows, cols), orig_dtype),
        grid=grid,
        in_specs=[
            pl.BlockSpec(memory_space=pltpu.SMEM),        # seed scalar
            pl.BlockSpec((tm, cols), lambda i: (i, 0)),   # x tile
        ],
        out_specs=pl.BlockSpec((tm, cols), lambda i: (i, 0)),
        compiler_params=pltpu.CompilerParams(
            dimension_semantics=("parallel",),
        ),
    )(seed_arr, x2d)

    out_flat = jnp.reshape(out2d, (-1,))
    if padded:
        out_flat = out_flat[:numel]
    return jnp.reshape(out_flat, orig_shape)


if __name__ == "__main__":
    key = jax.random.PRNGKey(0)
    # Input consistent with a generic NCHW activation tensor.
    x = jax.random.normal(key, (2, 4, 16, 16), dtype=jnp.float32)

    p = 0.5
    y_train = my_dropout(x, p=p, training=True, seed=123)
    y_train = jax.block_until_ready(y_train)

    y_eval = my_dropout(x, p=p, training=False)
    y_eval = jax.block_until_ready(y_eval)

    # Sanity checks: eval is identity; train outputs are either 0 or x/(1-p).
    assert y_eval.shape == x.shape and bool(jnp.allclose(y_eval, x))
    scaled = x / (1.0 - p)
    is_zero = jnp.isclose(y_train, 0.0)
    is_scaled = jnp.isclose(y_train, scaled, rtol=1e-6, atol=1e-6)
    assert bool(jnp.all(is_zero | is_scaled))
    # Keep rate should be roughly 1 - p.
    keep_rate = float(jnp.mean(is_scaled & ~is_zero))
    assert 0.3 < keep_rate < 0.7, f"keep_rate={keep_rate}"

    # Exercise the (rare) padding path with a numel not divisible by 128.
    x_odd = jax.random.normal(jax.random.PRNGKey(1), (3, 5, 7), dtype=jnp.float32)
    y_odd = jax.block_until_ready(my_dropout(x_odd, p=p, training=True, seed=7))
    assert y_odd.shape == x_odd.shape
    scaled_odd = x_odd / (1.0 - p)
    ok = jnp.isclose(y_odd, 0.0) | jnp.isclose(y_odd, scaled_odd, rtol=1e-6, atol=1e-6)
    assert bool(jnp.all(ok))

    print("KERNEL_OK")
</pallas_src>

<mosaic_0001>
module attributes {stable_mosaic.version = 11 : i64} {
  func.func @_dropout_kernel(%arg0: i32, %arg1: memref<1xi32, #tpu.memory_space<smem>>, %arg2: memref<1x2048xf32, #tpu.memory_space<vmem>>, %arg3: memref<1x2048xf32, #tpu.memory_space<vmem>>) attributes {dimension_semantics = [#tpu.dimension_semantics<parallel>], iteration_bounds = array<i64: 1>, scalar_prefetch = 0 : i64, scratch_operands = 0 : i64, tpu.core_type = #tpu.core_type<tc>, window_params = [{transform_indices = @transform_0, window_bounds = array<i64: 1>}, {transform_indices = @transform_1, window_bounds = array<i64: 1, 2048>}, {transform_indices = @transform_2, window_bounds = array<i64: 1, 2048>}]} {
    %0 = tpu.iota {dimensions = array<i32: 0>} : vector<1x2048xi32>
    %1 = tpu.iota {dimensions = array<i32: 1>} : vector<1x2048xi32>
    %c1_i32 = arith.constant 1 : i32
    %2 = arith.muli %arg0, %c1_i32 : i32
    %3 = vector.broadcast %2 : i32 to vector<1x2048xi32>
    %4 = arith.addi %3, %0 : vector<1x2048xi32>
    %c2048_i32 = arith.constant 2048 : i32
    %5 = vector.broadcast %c2048_i32 : i32 to vector<1x2048xi32>
    %6 = arith.muli %4, %5 : vector<1x2048xi32>
    %7 = arith.addi %6, %1 : vector<1x2048xi32>
    %c0 = arith.constant 0 : index
    %8 = memref.load %arg1[%c0] : memref<1xi32, #tpu.memory_space<smem>>
    %c-1640531527_i32 = arith.constant -1640531527 : i32
    %9 = arith.muli %8, %c-1640531527_i32 : i32
    %10 = vector.broadcast %9 : i32 to vector<1x2048xi32>
    %11 = arith.xori %7, %10 : vector<1x2048xi32>
    %c16_i32 = arith.constant 16 : i32
    %12 = vector.broadcast %c16_i32 : i32 to vector<1x2048xi32>
    %13 = arith.shrui %11, %12 : vector<1x2048xi32>
    %14 = arith.xori %11, %13 : vector<1x2048xi32>
    %c2146121005_i32 = arith.constant 2146121005 : i32
    %15 = vector.broadcast %c2146121005_i32 : i32 to vector<1x2048xi32>
    %16 = arith.muli %14, %15 : vector<1x2048xi32>
    %c15_i32 = arith.constant 15 : i32
    %17 = vector.broadcast %c15_i32 : i32 to vector<1x2048xi32>
    %18 = arith.shrui %16, %17 : vector<1x2048xi32>
    %19 = arith.xori %16, %18 : vector<1x2048xi32>
    %c-2073254261_i32 = arith.constant -2073254261 : i32
    %20 = vector.broadcast %c-2073254261_i32 : i32 to vector<1x2048xi32>
    %21 = arith.muli %19, %20 : vector<1x2048xi32>
    %c16_i32_0 = arith.constant 16 : i32
    %22 = vector.broadcast %c16_i32_0 : i32 to vector<1x2048xi32>
    %23 = arith.shrui %21, %22 : vector<1x2048xi32>
    %24 = arith.xori %21, %23 : vector<1x2048xi32>
    %c0_1 = arith.constant 0 : index
    %c0_2 = arith.constant 0 : index
    %25 = vector.load %arg2[%c0_1, %c0_2] : memref<1x2048xf32, #tpu.memory_space<vmem>>, vector<1x2048xf32>
    %c-2147483648_i32 = arith.constant -2147483648 : i32
    %26 = vector.broadcast %c-2147483648_i32 : i32 to vector<1x2048xi32>
    %27 = arith.cmpi ult, %24, %26 : vector<1x2048xi32>
    %cst = arith.constant 2.000000e+00 : f32
    %28 = vector.broadcast %cst : f32 to vector<1x2048xf32>
    %29 = arith.mulf %25, %28 : vector<1x2048xf32>
    %cst_3 = arith.constant 0.000000e+00 : f32
    %30 = vector.broadcast %cst_3 : f32 to vector<1x2048xf32>
    %31 = arith.select %27, %29, %30 : vector<1x2048xi1>, vector<1x2048xf32>
    %c0_4 = arith.constant 0 : index
    %c0_5 = arith.constant 0 : index
    %32 = vector.load %arg3[%c0_4, %c0_5] : memref<1x2048xf32, #tpu.memory_space<vmem>>, vector<1x2048xf32>
    tpu.vector_store %arg3[%c0_4, %c0_5], %31 {strides = array<i32>} : memref<1x2048xf32, #tpu.memory_space<vmem>>, vector<1x2048xf32>,
    return
  }
  func.func @transform_0(%arg0: i32) -> i32 {
    %c0_i32 = arith.constant 0 : i32
    %c0_i32_0 = arith.constant 0 : i32
    return %c0_i32 : i32
  }
  func.func @transform_1(%arg0: i32) -> (i32, i32) {
    %c0_i32 = arith.constant 0 : i32
    %c0_i32_0 = arith.constant 0 : i32
    return %arg0, %c0_i32 : i32, i32
  }
  func.func @transform_2(%arg0: i32) -> (i32, i32) {
    %c0_i32 = arith.constant 0 : i32
    %c0_i32_0 = arith.constant 0 : i32
    return %arg0, %c0_i32 : i32, i32
  }
}

</mosaic_0001>

<llo_original>
// kernel: tpu_custom_call.1
$region0: #{tpu_custom_call.1}
  #allocation0 [shape = 'u32[]', space=smem, size = 0x4, offset = 0x4, fixed_abs, tag = 'smem constant byte address 0x4 - core index']
  #allocation1 [shape = 'u32[72,128]{1,0:T(1,128)}', space=vmem, size = 0x9000, scoped, tag = 'internal scratch']
  #allocation2 [shape = 's32[1]{0:T(128)S(6)}', space=smem, size = 0x200, scoped, tag = 'scoped memory for tpu_custom_call.1']
  %s0 = inlined_call_operand.<no memory space> [shape: s32[1], index: 0, kind: input, shape index: {}]
  %s1 = inlined_call_operand.hbm [shape: f32[1,2048], index: 1, kind: input, shape index: {}]
  %s2 = inlined_call_operand.hbm [shape: f32[1,2048], index: 2, kind: output, shape index: {}]
  %s3 = sld [smem:[#allocation0]]
  $region22: #{tpu_custom_call.1} parent=0
    _
  %s5 = ssub.s32 1, %s3
  %s6 = scalar_select 0, %s5, %s3
  %7 = sst [smem:[#allocation2]] %s0
  $region1: #{tpu_custom_call.1} parent=0
    #allocation3 [shape = 'u8[8192]{0}', space=vmem, size = 0x2000, scoped, tag = 'input window, operand 1, single buffered']
    #allocation4 [shape = 's32[1]{0}', space=sflag, size = 0x4, scoped, tag = 'scoped memory for tpu_custom_call.1']
    #allocation5 [shape = 's32[1]{0}', space=sflag, size = 0x4, scoped, tag = 'scoped memory for tpu_custom_call.1']
    #allocation6 [shape = 'u8[8192]{0}', space=vmem, size = 0x2000, scoped, tag = 'output window, operand 0, single buffered']
    %8 = vsyncpa [#allocation4], 0
    %9 = vsyncpa [#allocation5], 0
    // Predicated region
    $region2: #{tpu_custom_call.1} parent=1 // pred_check
      _
    $region3: #{tpu_custom_call.1} parent=1 // pred_check_branch
      %11 = sbr.rel (0) target = $region5
    $region4: #{tpu_custom_call.1} parent=1 // pred_region
      _
    $region5: #{tpu_custom_call.1} parent=1 // pred_fallthru
      _
    // Predicated region
    $region6: #{tpu_custom_call.1} parent=1 // pred_check
      _
    $region7: #{tpu_custom_call.1} parent=1 // pred_check_branch
      %13 = sbr.rel (0) target = $region9
    $region8: #{tpu_custom_call.1} parent=1 // pred_region
      %15 = vsyncadd [#allocation4], 0
      %s17 = sshll.u32 %s1, 4
      %s18 = int_to_ptr.hbm [resolvable:$true] %s17
      %s19 = sshll.u32 [#allocation3], 4
      %s20 = int_to_ptr.vmem [resolvable:$true] %s19
      %22 = dma.hbm_to_vmem [thread:$0]  %s18, 256, %s20, [#allocation4]
    $region9: #{tpu_custom_call.1} parent=1 // pred_fallthru
      _
    // Predicated region
    $region10: #{tpu_custom_call.1} parent=1 // pred_check
      _
    $region11: #{tpu_custom_call.1} parent=1 // pred_check_branch
      %24 = sbr.rel (0) target = $region13
    $region12: #{tpu_custom_call.1} parent=1 // pred_region
      %26 = dma.done [#allocation4], 256
    $region13: #{tpu_custom_call.1} parent=1 // pred_fallthru
      _
    %v27 = vlaneseq
    %v28 = vshrl.u32 %v27, 7
    %v29 = vlaneseq
    %v30 = vand.u32 %v29, 127
    %v31 = vadd.s32 %v30, 128
    %v32 = vadd.s32 %v30, 256
    %v33 = vadd.s32 %v30, 384
    %v34 = vadd.s32 %v30, 512
    %v35 = vadd.s32 %v30, 640
    %v36 = vadd.s32 %v30, 768
    %v37 = vadd.s32 %v30, 896
    %v38 = vadd.s32 %v30, 1024
    %v39 = vadd.s32 %v30, 1152
    %v40 = vadd.s32 %v30, 1280
    %v41 = vadd.s32 %v30, 1408
    %v42 = vadd.s32 %v30, 1536
    %v43 = vadd.s32 %v30, 1664
    %v44 = vadd.s32 %v30, 1792
    %v45 = vadd.s32 %v30, 1920
    %v46 = vstv 0
    %v47 = vadd.s32 %v46, %v28
    %v48 = vmul.u32 %v47, 2048
    %v49 = vadd.s32 %v48, %v30
    %v50 = vadd.s32 %v48, %v31
    %v51 = vadd.s32 %v48, %v32
    %v52 = vadd.s32 %v48, %v33
    %v53 = vadd.s32 %v48, %v34
    %v54 = vadd.s32 %v48, %v35
    %v55 = vadd.s32 %v48, %v36
    %v56 = vadd.s32 %v48, %v37
    %v57 = vadd.s32 %v48, %v38
    %v58 = vadd.s32 %v48, %v39
    %v59 = vadd.s32 %v48, %v40
    %v60 = vadd.s32 %v48, %v41
    %v61 = vadd.s32 %v48, %v42
    %v62 = vadd.s32 %v48, %v43
    %v63 = vadd.s32 %v48, %v44
    %v64 = vadd.s32 %v48, %v45
    %s65 = sld [smem:[#allocation2]]
    %s66 = smul.u32 %s65, 2654435769
    %v67 = vstv %s66
    %v68 = vxor.u32 %v49, %v67
    %v69 = vxor.u32 %v50, %v67
    %v70 = vxor.u32 %v51, %v67
    %v71 = vxor.u32 %v52, %v67
    %v72 = vxor.u32 %v53, %v67
    %v73 = vxor.u32 %v54, %v67
    %v74 = vxor.u32 %v55, %v67
    %v75 = vxor.u32 %v56, %v67
    %v76 = vxor.u32 %v57, %v67
    %v77 = vxor.u32 %v58, %v67
    %v78 = vxor.u32 %v59, %v67
    %v79 = vxor.u32 %v60, %v67
    %v80 = vxor.u32 %v61, %v67
    %v81 = vxor.u32 %v62, %v67
    %v82 = vxor.u32 %v63, %v67
    %v83 = vxor.u32 %v64, %v67
    %v84 = vshrl.u32 %v68, 16
    %v85 = vshrl.u32 %v69, 16
    %v86 = vshrl.u32 %v70, 16
    %v87 = vshrl.u32 %v71, 16
    %v88 = vshrl.u32 %v72, 16
    %v89 = vshrl.u32 %v73, 16
    %v90 = vshrl.u32 %v74, 16
    %v91 = vshrl.u32 %v75, 16
    %v92 = vshrl.u32 %v76, 16
    %v93 = vshrl.u32 %v77, 16
    %v94 = vshrl.u32 %v78, 16
    %v95 = vshrl.u32 %v79, 16
    %v96 = vshrl.u32 %v80, 16
    %v97 = vshrl.u32 %v81, 16
    %v98 = vshrl.u32 %v82, 16
    %v99 = vshrl.u32 %v83, 16
    %v100 = vxor.u32 %v68, %v84
    %v101 = vxor.u32 %v69, %v85
    %v102 = vxor.u32 %v70, %v86
    %v103 = vxor.u32 %v71, %v87
    %v104 = vxor.u32 %v72, %v88
    %v105 = vxor.u32 %v73, %v89
    %v106 = vxor.u32 %v74, %v90
    %v107 = vxor.u32 %v75, %v91
    %v108 = vxor.u32 %v76, %v92
    %v109 = vxor.u32 %v77, %v93
    %v110 = vxor.u32 %v78, %v94
    %v111 = vxor.u32 %v79, %v95
    %v112 = vxor.u32 %v80, %v96
    %v113 = vxor.u32 %v81, %v97
    %v114 = vxor.u32 %v82, %v98
    %v115 = vxor.u32 %v83, %v99
    %v116 = vmul.u32 %v100, 2146121005
    %v117 = vmul.u32 %v101, 2146121005
    %v118 = vmul.u32 %v102, 2146121005
    %v119 = vmul.u32 %v103, 2146121005
    %v120 = vmul.u32 %v104, 2146121005
    %v121 = vmul.u32 %v105, 2146121005
    %v122 = vmul.u32 %v106, 2146121005
    %v123 = vmul.u32 %v107, 2146121005
    %v124 = vmul.u32 %v108, 2146121005
    %v125 = vmul.u32 %v109, 2146121005
    %v126 = vmul.u32 %v110, 2146121005
    %v127 = vmul.u32 %v111, 2146121005
    %v128 = vmul.u32 %v112, 2146121005
    %v129 = vmul.u32 %v113, 2146121005
    %v130 = vmul.u32 %v114, 2146121005
    %v131 = vmul.u32 %v115, 2146121005
    %v132 = vshrl.u32 %v116, 15
    %v133 = vshrl.u32 %v117, 15
    %v134 = vshrl.u32 %v118, 15
    %v135 = vshrl.u32 %v119, 15
    %v136 = vshrl.u32 %v120, 15
    %v137 = vshrl.u32 %v121, 15
    %v138 = vshrl.u32 %v122, 15
    %v139 = vshrl.u32 %v123, 15
    %v140 = vshrl.u32 %v124, 15
    %v141 = vshrl.u32 %v125, 15
    %v142 = vshrl.u32 %v126, 15
    %v143 = vshrl.u32 %v127, 15
    %v144 = vshrl.u32 %v128, 15
    %v145 = vshrl.u32 %v129, 15
    %v146 = vshrl.u32 %v130, 15
    %v147 = vshrl.u32 %v131, 15
    %v148 = vxor.u32 %v116, %v132
    %v149 = vxor.u32 %v117, %v133
    %v150 = vxor.u32 %v118, %v134
    %v151 = vxor.u32 %v119, %v135
    %v152 = vxor.u32 %v120, %v136
    %v153 = vxor.u32 %v121, %v137
    %v154 = vxor.u32 %v122, %v138
    %v155 = vxor.u32 %v123, %v139
    %v156 = vxor.u32 %v124, %v140
    %v157 = vxor.u32 %v125, %v141
    %v158 = vxor.u32 %v126, %v142
    %v159 = vxor.u32 %v127, %v143
    %v160 = vxor.u32 %v128, %v144
    %v161 = vxor.u32 %v129, %v145
    %v162 = vxor.u32 %v130, %v146
    %v163 = vxor.u32 %v131, %v147
    %v164 = vmul.u32 %v148, 2221713035
    %v165 = vmul.u32 %v149, 2221713035
    %v166 = vmul.u32 %v150, 2221713035
    %v167 = vmul.u32 %v151, 2221713035
    %v168 = vmul.u32 %v152, 2221713035
    %v169 = vmul.u32 %v153, 2221713035
    %v170 = vmul.u32 %v154, 2221713035
    %v171 = vmul.u32 %v155, 2221713035
    %v172 = vmul.u32 %v156, 2221713035
    %v173 = vmul.u32 %v157, 2221713035
    %v174 = vmul.u32 %v158, 2221713035
    %v175 = vmul.u32 %v159, 2221713035
    %v176 = vmul.u32 %v160, 2221713035
    %v177 = vmul.u32 %v161, 2221713035
    %v178 = vmul.u32 %v162, 2221713035
    %v179 = vmul.u32 %v163, 2221713035
    %v180 = vshrl.u32 %v164, 16
    %v181 = vshrl.u32 %v165, 16
    %v182 = vshrl.u32 %v166, 16
    %v183 = vshrl.u32 %v167, 16
    %v184 = vshrl.u32 %v168, 16
    %v185 = vshrl.u32 %v169, 16
    %v186 = vshrl.u32 %v170, 16
    %v187 = vshrl.u32 %v171, 16
    %v188 = vshrl.u32 %v172, 16
    %v189 = vshrl.u32 %v173, 16
    %v190 = vshrl.u32 %v174, 16
    %v191 = vshrl.u32 %v175, 16
    %v192 = vshrl.u32 %v176, 16
    %v193 = vshrl.u32 %v177, 16
    %v194 = vshrl.u32 %v178, 16
    %v195 = vshrl.u32 %v179, 16
    %v196 = vxor.u32 %v164, %v180
    %v197 = vxor.u32 %v165, %v181
    %v198 = vxor.u32 %v166, %v182
    %v199 = vxor.u32 %v167, %v183
    %v200 = vxor.u32 %v168, %v184
    %v201 = vxor.u32 %v169, %v185
    %v202 = vxor.u32 %v170, %v186
    %v203 = vxor.u32 %v171, %v187
    %v204 = vxor.u32 %v172, %v188
    %v205 = vxor.u32 %v173, %v189
    %v206 = vxor.u32 %v174, %v190
    %v207 = vxor.u32 %v175, %v191
    %v208 = vxor.u32 %v176, %v192
    %v209 = vxor.u32 %v177, %v193
    %v210 = vxor.u32 %v178, %v194
    %v211 = vxor.u32 %v179, %v195
    %v212 = vld [vmem:[#allocation3] sm:$0xff]
    %v213 = vld [vmem:[#allocation3 + $0x8] sm:$0xff]
    %v214 = vadd.s32 %v196, 2147483648
    %vm216 = vcmp.lt.s32.totalorder %v214, 0
    %v217 = vadd.s32 %v197, 2147483648
    %vm219 = vcmp.lt.s32.totalorder %v217, 0
    %v220 = vadd.s32 %v198, 2147483648
    %vm222 = vcmp.lt.s32.totalorder %v220, 0
    %v223 = vadd.s32 %v199, 2147483648
    %vm225 = vcmp.lt.s32.totalorder %v223, 0
    %v226 = vadd.s32 %v200, 2147483648
    %vm228 = vcmp.lt.s32.totalorder %v226, 0
    %v229 = vadd.s32 %v201, 2147483648
    %vm231 = vcmp.lt.s32.totalorder %v229, 0
    %v232 = vadd.s32 %v202, 2147483648
    %vm234 = vcmp.lt.s32.totalorder %v232, 0
    %v235 = vadd.s32 %v203, 2147483648
    %vm237 = vcmp.lt.s32.totalorder %v235, 0
    %v238 = vadd.s32 %v204, 2147483648
    %vm240 = vcmp.lt.s32.totalorder %v238, 0
    %v241 = vadd.s32 %v205, 2147483648
    %vm243 = vcmp.lt.s32.totalorder %v241, 0
    %v244 = vadd.s32 %v206, 2147483648
    %vm246 = vcmp.lt.s32.totalorder %v244, 0
    %v247 = vadd.s32 %v207, 2147483648
    %vm249 = vcmp.lt.s32.totalorder %v247, 0
    %v250 = vadd.s32 %v208, 2147483648
    %vm252 = vcmp.lt.s32.totalorder %v250, 0
    %v253 = vadd.s32 %v209, 2147483648
    %vm255 = vcmp.lt.s32.totalorder %v253, 0
    %v256 = vadd.s32 %v210, 2147483648
    %vm258 = vcmp.lt.s32.totalorder %v256, 0
    %v259 = vadd.s32 %v211, 2147483648
    %vm261 = vcmp.lt.s32.totalorder %v259, 0
    %v262 = vmul.f32 %v212, 2.0
    %v263 = vmul.f32 %v213, 2.0
    %v266 = vperm.slane %v262, 0
    %v267 = vperm.slane %v262, 1
    %v268 = vperm.slane %v262, 2
    %v269 = vperm.slane %v262, 3
    %v270 = vperm.slane %v262, 4
    %v271 = vperm.slane %v262, 5
    %v272 = vperm.slane %v262, 6
    %v273 = vperm.slane %v262, 7
    %v274 = vperm.slane %v263, 0
    %v275 = vperm.slane %v263, 1
    %v276 = vperm.slane %v263, 2
    %v277 = vperm.slane %v263, 3
    %v278 = vperm.slane %v263, 4
    %v279 = vperm.slane %v263, 5
    %v280 = vperm.slane %v263, 6
    %v281 = vperm.slane %v263, 7
    %v298 = vsel %vm216, %v266, 0.0
    %v299 = vsel %vm219, %v267, 0.0
    %v300 = vsel %vm222, %v268, 0.0
    %v301 = vsel %vm225, %v269, 0.0
    %v302 = vsel %vm228, %v270, 0.0
    %v303 = vsel %vm231, %v271, 0.0
    %v304 = vsel %vm234, %v272, 0.0
    %v305 = vsel %vm237, %v273, 0.0
    %v306 = vsel %vm240, %v274, 0.0
    %v307 = vsel %vm243, %v275, 0.0
    %v308 = vsel %vm246, %v276, 0.0
    %v309 = vsel %vm249, %v277, 0.0
    %v310 = vsel %vm252, %v278, 0.0
    %v311 = vsel %vm255, %v279, 0.0
    %v312 = vsel %vm258, %v280, 0.0
    %v313 = vsel %vm261, %v281, 0.0
    %v330 = vrot.slane %v299, 7
    %v331 = vrot.slane %v300, 6
    %v332 = vrot.slane %v301, 5
    %v333 = vrot.slane %v302, 4
    %v334 = vrot.slane %v303, 3
    %v335 = vrot.slane %v304, 2
    %v336 = vrot.slane %v305, 1
    %v337 = vrot.slane %v307, 7
    %v338 = vrot.slane %v308, 6
    %v339 = vrot.slane %v309, 5
    %v340 = vrot.slane %v310, 4
    %v341 = vrot.slane %v311, 3
    %v342 = vrot.slane %v312, 2
    %v343 = vrot.slane %v313, 1
    %vm344 = vcmask 1040384
    %v345 = vsel %vm344, %v298, %v330
    %vm346 = vcmask 1042434
    %v347 = vsel %vm346, %v331, %v332
    %vm348 = vcmask 1041408
    %v349 = vsel %vm348, %v345, %v347
    %vm350 = vcmask 1044484
    %v351 = vsel %vm350, %v333, %v334
    %vm352 = vcmask 1046534
    %v353 = vsel %vm352, %v335, %v336
    %vm354 = vcmask 1045508
    %v355 = vsel %vm354, %v351, %v353
    %vm356 = vcmask 1043456
    %v357 = vsel %vm356, %v349, %v355
    %v358 = vsel %vm344, %v306, %v337
    %v359 = vsel %vm346, %v338, %v339
    %v360 = vsel %vm348, %v358, %v359
    %v361 = vsel %vm350, %v340, %v341
    %v362 = vsel %vm352, %v342, %v343
    %v363 = vsel %vm354, %v361, %v362
    %v364 = vsel %vm356, %v360, %v363
    %367 = vst [vmem:[#allocation6] sm:$0xff] %v357
    %368 = vst [vmem:[#allocation6 + $0x8] sm:$0xff] %v364
    // Predicated region
    $region14: #{tpu_custom_call.1} parent=1 // pred_check
      _
    $region15: #{tpu_custom_call.1} parent=1 // pred_check_branch
      %370 = sbr.rel (0) target = $region17
    $region16: #{tpu_custom_call.1} parent=1 // pred_region
      %372 = vsyncadd [#allocation5], 0
      %s374 = sshll.u32 [#allocation6], 4
      %s375 = int_to_ptr.vmem [resolvable:$true] %s374
      %s376 = sshll.u32 %s2, 4
      %s377 = int_to_ptr.hbm [resolvable:$true] %s376
      %379 = dma.vmem_to_hbm [thread:$0]  %s375, 256, %s377, [#allocation5]
    $region17: #{tpu_custom_call.1} parent=1 // pred_fallthru
      _
    // Predicated region
    $region18: #{tpu_custom_call.1} parent=1 // pred_check
      _
    $region19: #{tpu_custom_call.1} parent=1 // pred_check_branch
      %381 = sbr.rel (0) target = $region21
    $region20: #{tpu_custom_call.1} parent=1 // pred_region
      %383 = dma.done [#allocation5], 256
    $region21: #{tpu_custom_call.1} parent=1 // pred_fallthru
      _
    %384 = vsyncpa [#allocation4], 1
    %385 = vsyncpa [#allocation5], 1

</llo_original>
